<compile_context>
chip_gen: v7x
topology: tpu7x:2x2x1
jax: 0.10.0
libtpu: 0.0.40
codegen_flags: <defaults>
</compile_context>

<pallas_src>
import functools

import jax
import jax.numpy as jnp
import numpy as np
from jax import lax
from jax.experimental import pallas as pl
from jax.experimental.pallas import tpu as pltpu

# ---------------------------------------------------------------------------
# Numerical-Recipes Lanczos (g=5, n=6):
#   ser(x) = c0 + sum_{k=1..6} c_k/(x+k) = P(x)/Q(x),  Q(x) = prod_{k=1..6}(x+k)
# P coefficients are computed once in float64 at import time (descending order).
# ---------------------------------------------------------------------------
_NR_C0 = 1.000000000190015
_NR_COEFS = (
    76.18009172947146,
    -86.50532032941677,
    24.01409824083091,
    -1.231739572450155,
    1.208650973866179e-3,
    -5.395239384953e-6,
)


def _poly_prod(shifts):
    """Coefficients (highest degree first) of prod_k (x + shift_k)."""
    c = np.array([1.0], dtype=np.float64)
    for s in shifts:
        c = np.convolve(c, np.array([1.0, float(s)], dtype=np.float64))
    return c


def _lanczos_p_coeffs():
    q = _poly_prod(range(1, 7))                      # Q(x), degree 6
    p = _NR_C0 * q
    for k, ck in zip(range(1, 7), _NR_COEFS):
        pk = _poly_prod([j for j in range(1, 7) if j != k])   # degree 5
        p = p + ck * np.concatenate(([0.0], pk))
    return tuple(float(v) for v in p)


_P_COEFFS = _lanczos_p_coeffs()        # 7 coefficients, degree 6


def _p_eval(x):
    """P(x) by Horner; first step is c0*x + c1 (no constant splat)."""
    acc = _P_COEFFS[0] * x + _P_COEFFS[1]
    for c in _P_COEFFS[2:]:
        acc = acc * x + c
    return acc


def _q_eval(x):
    """Q(x) = (x+1)...(x+6) in factored form: w = x(x+7); (w+6)(w+10)(w+12)."""
    w = x * (x + 7.0)
    return (w + 6.0) * (w + 10.0) * (w + 12.0)


def _nll_elements(a, b, t):
    """Elementwise Type-II NLL (all float32, all VPU/EUP ops)."""
    ta = t + a              # targets + a
    tb = (1.0 - t) + b      # 1 - targets + b

    def main_term(x):       # (x + 0.5) * log(x + g + 0.5), g = 5
        return (x + 0.5) * jnp.log(x + 5.5)

    main = main_term(a) + main_term(b) - main_term(ta) - main_term(tb)

    pa, qa = _p_eval(a), _q_eval(a)
    pb, qb = _p_eval(b), _q_eval(b)
    pc, qc = _p_eval(ta), _q_eval(ta)
    pd, qd = _p_eval(tb), _q_eval(tb)

    # Pair each P with the opposite Q so intermediate products stay O(x^12),
    # far from the f32 range limit for reasonable Beta parameters.
    r1 = (pa * qc) * pl.reciprocal(qa * pc, approx=True)
    r2 = (pb * qd) * pl.reciprocal(qb * pd, approx=True)
    r3 = ((a + b) * ta * tb) * pl.reciprocal(a * b, approx=True)
    return main + 1.0 + jnp.log(r1 * r2 * r3)


# ---------------------------------------------------------------------------
# Kernel: operates on (block_rows, width) tiles of a, b, t (width = 128 for
# the flattened path, width = C for the direct path).  Each grid step writes
# an independent (1, 8, width) partial sum (sublane-group adds only; the
# reshape is aligned with the native (8,128) tiling so it is layout-free).
# Tail masking (padded / OOB elements) only runs on the final grid step.
# ---------------------------------------------------------------------------
def _type2_nll_kernel(a_ref, b_ref, t_ref, out_ref, *, n_valid, block_rows, width):
    i = pl.program_id(0)

    a = a_ref[...].astype(jnp.float32)
    b = b_ref[...].astype(jnp.float32)
    t = t_ref[...].astype(jnp.float32)

    nll = _nll_elements(a, b, t)

    def partial_sum(vals):
        # (block_rows, width) -> (1, 8, width): pure vector adds, no XLU reduce.
        return jnp.sum(vals.reshape(-1, 8, width), axis=0, keepdims=True)

    last = pl.num_programs(0) - 1

    @pl.when(i != last)
    def _():
        out_ref[...] = partial_sum(nll)

    @pl.when(i == last)
    def _():
        row = lax.broadcasted_iota(jnp.int32, nll.shape, 0)
        col = lax.broadcasted_iota(jnp.int32, nll.shape, 1)
        remaining = n_valid - i * (block_rows * width)
        valid = (row * width + col) < remaining
        out_ref[...] = partial_sum(jnp.where(valid, nll, 0.0))


# ---------------------------------------------------------------------------
# Block-size heuristic: fit double-buffered inputs in a conservative VMEM
# budget (safe on v5e's 16 MiB scoped default), cap at max_block_rows, and cap
# at ceil(rows/2) so the 1-D parallel grid has >= 2 steps when possible (v7x).
# ---------------------------------------------------------------------------
def _pick_block_rows(n_rows, row_bytes, max_block_rows, vmem_budget_bytes=8 << 20):
    budget_rows = max(8, vmem_budget_bytes // (2 * max(int(row_bytes), 1)))
    target = -(-n_rows // 2) if n_rows >= 16 else n_rows
    br = min(int(max_block_rows), int(budget_rows), ((int(target) + 7) // 8) * 8)
    return max(8, (br // 8) * 8)


_FLOPS_PER_ELEM = 115
_TRANSCENDENTALS_PER_ELEM = 8   # 5 logs + 3 approx reciprocals


def _compiler_params():
    return pltpu.CompilerParams(dimension_semantics=("parallel",))


# Direct path (C % 128 == 0, N >= 8): no wrapper copies.  logits is passed
# twice; the a/b split is done by the column-block offset in the index_map.
def _launch_direct(logits, targets, c, max_block_rows):
    n = logits.shape[0]
    itemsize = max(jnp.dtype(logits.dtype).itemsize, jnp.dtype(targets.dtype).itemsize)
    block_rows = _pick_block_rows(n, 3 * c * itemsize, max_block_rows)
    grid_n = -(-n // block_rows)
    elems = grid_n * block_rows * c

    kernel = functools.partial(
        _type2_nll_kernel, n_valid=n * c, block_rows=block_rows, width=c)
    cost = pl.CostEstimate(
        flops=_FLOPS_PER_ELEM * elems,
        transcendentals=_TRANSCENDENTALS_PER_ELEM * elems,
        bytes_accessed=3 * itemsize * elems + grid_n * 8 * c * 4)

    return pl.pallas_call(
        kernel,
        out_shape=jax.ShapeDtypeStruct((grid_n, 8, c), jnp.float32),
        grid=(grid_n,),
        in_specs=[
            pl.BlockSpec((block_rows, c), lambda i: (i, 0)),   # a = logits[:, :C]
            pl.BlockSpec((block_rows, c), lambda i: (i, 1)),   # b = logits[:, C:]
            pl.BlockSpec((block_rows, c), lambda i: (i, 0)),   # targets
        ],
        out_specs=pl.BlockSpec((1, 8, c), lambda i: (i, 0, 0)),
        compiler_params=_compiler_params(),
        cost_estimate=cost,
    )(logits, logits, targets)


# Flatten path (small / unaligned C): lane-dense (rows, 128) view so every
# vreg is fully populated.  Inputs keep their incoming dtype (bf16 stays bf16
# through the pad; the cast to f32 happens inside the kernel).
def _launch_flat(logits, targets, c, max_block_rows):
    n = logits.shape[0]
    lanes = 128
    total = n * c
    rows = -(-total // lanes)
    itemsize = max(jnp.dtype(logits.dtype).itemsize, jnp.dtype(targets.dtype).itemsize)
    block_rows = _pick_block_rows(rows, 3 * lanes * itemsize, max_block_rows)
    grid_n = -(-rows // block_rows)
    padded_rows = grid_n * block_rows
    padded_len = padded_rows * lanes

    a = logits[:, :c]
    b = logits[:, c:]

    def flat_pad(x, fill):
        x = x.reshape(-1)
        pad = padded_len - x.shape[0]
        if pad:   # skip the pad entirely when total already divides the block
            x = jnp.pad(x, (0, pad), constant_values=fill)
        return x.reshape(padded_rows, lanes)

    # Pad with a=b=1, t=0: finite lgamma arguments; masked out inside the kernel.
    a_p = flat_pad(a, 1.0)
    b_p = flat_pad(b, 1.0)
    t_p = flat_pad(targets, 0.0)

    kernel = functools.partial(
        _type2_nll_kernel, n_valid=total, block_rows=block_rows, width=lanes)
    cost = pl.CostEstimate(
        flops=_FLOPS_PER_ELEM * padded_len,
        transcendentals=_TRANSCENDENTALS_PER_ELEM * padded_len,
        bytes_accessed=3 * itemsize * padded_len + grid_n * 8 * lanes * 4)

    return pl.pallas_call(
        kernel,
        out_shape=jax.ShapeDtypeStruct((grid_n, 8, lanes), jnp.float32),
        grid=(grid_n,),
        in_specs=[
            pl.BlockSpec((block_rows, lanes), lambda i: (i, 0)),
            pl.BlockSpec((block_rows, lanes), lambda i: (i, 0)),
            pl.BlockSpec((block_rows, lanes), lambda i: (i, 0)),
        ],
        out_specs=pl.BlockSpec((1, 8, lanes), lambda i: (i, 0, 0)),
        compiler_params=_compiler_params(),
        cost_estimate=cost,
    )(a_p, b_p, t_p)


def type2_nll_loss(logits, targets, reduction="mean", max_block_rows=2048):
    if reduction not in ("mean", "sum"):
        # TODO(synk): reduction='none' (per-row vector output) not wired up; module default is 'mean'.
        raise NotImplementedError("only 'mean' and 'sum' reductions are implemented")

    n, two_c = logits.shape
    c = two_c // 2
    if targets.shape != (n, c):
        raise ValueError(f"targets shape {targets.shape} != {(n, c)}")

    if c % 128 == 0 and n >= 8:
        partials = _launch_direct(logits, targets, c, max_block_rows)
    else:
        partials = _launch_flat(logits, targets, c, max_block_rows)

    total_sum = jnp.sum(partials)
    if reduction == "mean":
        return total_sum / n
    return total_sum


# ---------------------------------------------------------------------------
# Pure-JAX reference (for a correctness sanity check).
# ---------------------------------------------------------------------------
def _reference(logits, targets, reduction="mean"):
    c = logits.shape[1] // 2
    a = logits[:, :c]
    b = logits[:, c:]
    lg = jax.scipy.special.gammaln
    log_beta_a_b = lg(a) + lg(b) - lg(a + b)
    log_lik = lg(targets + a) + lg(1.0 - targets + b) - lg(1.0 + a + b) - log_beta_a_b
    nll = (-log_lik).sum(axis=1)
    return nll.mean() if reduction == "mean" else nll.sum()


if __name__ == "__main__":
    key = jax.random.PRNGKey(0)

    # Case 1: C = 32 (lane-unaligned)  -> lane-dense flatten path.
    # Case 2: C = 128 (lane-aligned)   -> direct no-copy path.
    for n, c in ((16, 32), (16, 128)):
        k1, k2, key = jax.random.split(key, 3)
        # Beta parameters must be strictly positive (same domain as the module).
        logits = jax.nn.softplus(jax.random.normal(k1, (n, 2 * c), jnp.float32)) + 0.1
        targets = jax.random.uniform(k2, (n, c), dtype=jnp.float32)

        for red in ("mean", "sum"):
            out = jax.block_until_ready(type2_nll_loss(logits, targets, red))
            ref = _reference(logits, targets, red)
            if not np.allclose(np.asarray(out), np.asarray(ref), rtol=5e-3, atol=1e-2):
                raise AssertionError(
                    f"{red} mismatch (n={n}, c={c}): kernel={out} reference={ref}")

    print("KERNEL_OK")
</pallas_src>

<mosaic_0001>
module attributes {stable_mosaic.version = 11 : i64} {
  func.func @_type2_nll_kernel(%arg0: i32, %arg1: memref<8x128xf32, #tpu.memory_space<vmem>>, %arg2: memref<8x128xf32, #tpu.memory_space<vmem>>, %arg3: memref<8x128xf32, #tpu.memory_space<vmem>>, %arg4: memref<1x8x128xf32, #tpu.memory_space<vmem>>) attributes {dimension_semantics = [#tpu.dimension_semantics<parallel>], iteration_bounds = array<i64: 1>, scalar_prefetch = 0 : i64, scratch_operands = 0 : i64, tpu.core_type = #tpu.core_type<tc>, window_params = [{transform_indices = @transform_0, window_bounds = array<i64: 8, 128>}, {transform_indices = @transform_1, window_bounds = array<i64: 8, 128>}, {transform_indices = @transform_2, window_bounds = array<i64: 8, 128>}, {transform_indices = @transform_3, window_bounds = array<i64: 1, 8, 128>}]} {
    %c0 = arith.constant 0 : index
    %c0_0 = arith.constant 0 : index
    %0 = vector.load %arg1[%c0, %c0_0] : memref<8x128xf32, #tpu.memory_space<vmem>>, vector<8x128xf32>
    %c0_1 = arith.constant 0 : index
    %c0_2 = arith.constant 0 : index
    %1 = vector.load %arg2[%c0_1, %c0_2] : memref<8x128xf32, #tpu.memory_space<vmem>>, vector<8x128xf32>
    %c0_3 = arith.constant 0 : index
    %c0_4 = arith.constant 0 : index
    %2 = vector.load %arg3[%c0_3, %c0_4] : memref<8x128xf32, #tpu.memory_space<vmem>>, vector<8x128xf32>
    %3 = arith.addf %2, %0 : vector<8x128xf32>
    %cst = arith.constant 1.000000e+00 : f32
    %4 = vector.broadcast %cst : f32 to vector<8x128xf32>
    %5 = arith.subf %4, %2 : vector<8x128xf32>
    %6 = arith.addf %5, %1 : vector<8x128xf32>
    %cst_5 = arith.constant 5.000000e-01 : f32
    %7 = vector.broadcast %cst_5 : f32 to vector<8x128xf32>
    %8 = arith.addf %0, %7 : vector<8x128xf32>
    %cst_6 = arith.constant 5.500000e+00 : f32
    %9 = vector.broadcast %cst_6 : f32 to vector<8x128xf32>
    %10 = arith.addf %0, %9 : vector<8x128xf32>
    %11 = math.log %10 : vector<8x128xf32>
    %12 = arith.mulf %8, %11 : vector<8x128xf32>
    %cst_7 = arith.constant 5.000000e-01 : f32
    %13 = vector.broadcast %cst_7 : f32 to vector<8x128xf32>
    %14 = arith.addf %1, %13 : vector<8x128xf32>
    %cst_8 = arith.constant 5.500000e+00 : f32
    %15 = vector.broadcast %cst_8 : f32 to vector<8x128xf32>
    %16 = arith.addf %1, %15 : vector<8x128xf32>
    %17 = math.log %16 : vector<8x128xf32>
    %18 = arith.mulf %14, %17 : vector<8x128xf32>
    %19 = arith.addf %12, %18 : vector<8x128xf32>
    %cst_9 = arith.constant 5.000000e-01 : f32
    %20 = vector.broadcast %cst_9 : f32 to vector<8x128xf32>
    %21 = arith.addf %3, %20 : vector<8x128xf32>
    %cst_10 = arith.constant 5.500000e+00 : f32
    %22 = vector.broadcast %cst_10 : f32 to vector<8x128xf32>
    %23 = arith.addf %3, %22 : vector<8x128xf32>
    %24 = math.log %23 : vector<8x128xf32>
    %25 = arith.mulf %21, %24 : vector<8x128xf32>
    %26 = arith.subf %19, %25 : vector<8x128xf32>
    %cst_11 = arith.constant 5.000000e-01 : f32
    %27 = vector.broadcast %cst_11 : f32 to vector<8x128xf32>
    %28 = arith.addf %6, %27 : vector<8x128xf32>
    %cst_12 = arith.constant 5.500000e+00 : f32
    %29 = vector.broadcast %cst_12 : f32 to vector<8x128xf32>
    %30 = arith.addf %6, %29 : vector<8x128xf32>
    %31 = math.log %30 : vector<8x128xf32>
    %32 = arith.mulf %28, %31 : vector<8x128xf32>
    %33 = arith.subf %26, %32 : vector<8x128xf32>
    %cst_13 = arith.constant 1.000000e+00 : f32
    %34 = vector.broadcast %cst_13 : f32 to vector<8x128xf32>
    %35 = arith.mulf %34, %0 : vector<8x128xf32>
    %cst_14 = arith.constant 33.4583321 : f32
    %36 = vector.broadcast %cst_14 : f32 to vector<8x128xf32>
    %37 = arith.addf %35, %36 : vector<8x128xf32>
    %38 = arith.mulf %37, %0 : vector<8x128xf32>
    %cst_15 = arith.constant 466.334198 : f32
    %39 = vector.broadcast %cst_15 : f32 to vector<8x128xf32>
    %40 = arith.addf %38, %39 : vector<8x128xf32>
    %41 = arith.mulf %40, %0 : vector<8x128xf32>
    %cst_16 = arith.constant 3465.70947 : f32
    %42 = vector.broadcast %cst_16 : f32 to vector<8x128xf32>
    %43 = arith.addf %41, %42 : vector<8x128xf32>
    %44 = arith.mulf %43, %0 : vector<8x128xf32>
    %cst_17 = arith.constant 14484.9141 : f32
    %45 = vector.broadcast %cst_17 : f32 to vector<8x128xf32>
    %46 = arith.addf %44, %45 : vector<8x128xf32>
    %47 = arith.mulf %46, %0 : vector<8x128xf32>
    %cst_18 = arith.constant 32281.0645 : f32
    %48 = vector.broadcast %cst_18 : f32 to vector<8x128xf32>
    %49 = arith.addf %47, %48 : vector<8x128xf32>
    %50 = arith.mulf %49, %0 : vector<8x128xf32>
    %cst_19 = arith.constant 29969.5938 : f32
    %51 = vector.broadcast %cst_19 : f32 to vector<8x128xf32>
    %52 = arith.addf %50, %51 : vector<8x128xf32>
    %cst_20 = arith.constant 7.000000e+00 : f32
    %53 = vector.broadcast %cst_20 : f32 to vector<8x128xf32>
    %54 = arith.addf %0, %53 : vector<8x128xf32>
    %55 = arith.mulf %0, %54 : vector<8x128xf32>
    %cst_21 = arith.constant 6.000000e+00 : f32
    %56 = vector.broadcast %cst_21 : f32 to vector<8x128xf32>
    %57 = arith.addf %55, %56 : vector<8x128xf32>
    %cst_22 = arith.constant 1.000000e+01 : f32
    %58 = vector.broadcast %cst_22 : f32 to vector<8x128xf32>
    %59 = arith.addf %55, %58 : vector<8x128xf32>
    %60 = arith.mulf %57, %59 : vector<8x128xf32>
    %cst_23 = arith.constant 1.200000e+01 : f32
    %61 = vector.broadcast %cst_23 : f32 to vector<8x128xf32>
    %62 = arith.addf %55, %61 : vector<8x128xf32>
    %63 = arith.mulf %60, %62 : vector<8x128xf32>
    %cst_24 = arith.constant 1.000000e+00 : f32
    %64 = vector.broadcast %cst_24 : f32 to vector<8x128xf32>
    %65 = arith.mulf %64, %1 : vector<8x128xf32>
    %cst_25 = arith.constant 33.4583321 : f32
    %66 = vector.broadcast %cst_25 : f32 to vector<8x128xf32>
    %67 = arith.addf %65, %66 : vector<8x128xf32>
    %68 = arith.mulf %67, %1 : vector<8x128xf32>
    %cst_26 = arith.constant 466.334198 : f32
    %69 = vector.broadcast %cst_26 : f32 to vector<8x128xf32>
    %70 = arith.addf %68, %69 : vector<8x128xf32>
    %71 = arith.mulf %70, %1 : vector<8x128xf32>
    %cst_27 = arith.constant 3465.70947 : f32
    %72 = vector.broadcast %cst_27 : f32 to vector<8x128xf32>
    %73 = arith.addf %71, %72 : vector<8x128xf32>
    %74 = arith.mulf %73, %1 : vector<8x128xf32>
    %cst_28 = arith.constant 14484.9141 : f32
    %75 = vector.broadcast %cst_28 : f32 to vector<8x128xf32>
    %76 = arith.addf %74, %75 : vector<8x128xf32>
    %77 = arith.mulf %76, %1 : vector<8x128xf32>
    %cst_29 = arith.constant 32281.0645 : f32
    %78 = vector.broadcast %cst_29 : f32 to vector<8x128xf32>
    %79 = arith.addf %77, %78 : vector<8x128xf32>
    %80 = arith.mulf %79, %1 : vector<8x128xf32>
    %cst_30 = arith.constant 29969.5938 : f32
    %81 = vector.broadcast %cst_30 : f32 to vector<8x128xf32>
    %82 = arith.addf %80, %81 : vector<8x128xf32>
    %cst_31 = arith.constant 7.000000e+00 : f32
    %83 = vector.broadcast %cst_31 : f32 to vector<8x128xf32>
    %84 = arith.addf %1, %83 : vector<8x128xf32>
    %85 = arith.mulf %1, %84 : vector<8x128xf32>
    %cst_32 = arith.constant 6.000000e+00 : f32
    %86 = vector.broadcast %cst_32 : f32 to vector<8x128xf32>
    %87 = arith.addf %85, %86 : vector<8x128xf32>
    %cst_33 = arith.constant 1.000000e+01 : f32
    %88 = vector.broadcast %cst_33 : f32 to vector<8x128xf32>
    %89 = arith.addf %85, %88 : vector<8x128xf32>
    %90 = arith.mulf %87, %89 : vector<8x128xf32>
    %cst_34 = arith.constant 1.200000e+01 : f32
    %91 = vector.broadcast %cst_34 : f32 to vector<8x128xf32>
    %92 = arith.addf %85, %91 : vector<8x128xf32>
    %93 = arith.mulf %90, %92 : vector<8x128xf32>
    %cst_35 = arith.constant 1.000000e+00 : f32
    %94 = vector.broadcast %cst_35 : f32 to vector<8x128xf32>
    %95 = arith.mulf %94, %3 : vector<8x128xf32>
    %cst_36 = arith.constant 33.4583321 : f32
    %96 = vector.broadcast %cst_36 : f32 to vector<8x128xf32>
    %97 = arith.addf %95, %96 : vector<8x128xf32>
    %98 = arith.mulf %97, %3 : vector<8x128xf32>
    %cst_37 = arith.constant 466.334198 : f32
    %99 = vector.broadcast %cst_37 : f32 to vector<8x128xf32>
    %100 = arith.addf %98, %99 : vector<8x128xf32>
    %101 = arith.mulf %100, %3 : vector<8x128xf32>
    %cst_38 = arith.constant 3465.70947 : f32
    %102 = vector.broadcast %cst_38 : f32 to vector<8x128xf32>
    %103 = arith.addf %101, %102 : vector<8x128xf32>
    %104 = arith.mulf %103, %3 : vector<8x128xf32>
    %cst_39 = arith.constant 14484.9141 : f32
    %105 = vector.broadcast %cst_39 : f32 to vector<8x128xf32>
    %106 = arith.addf %104, %105 : vector<8x128xf32>
    %107 = arith.mulf %106, %3 : vector<8x128xf32>
    %cst_40 = arith.constant 32281.0645 : f32
    %108 = vector.broadcast %cst_40 : f32 to vector<8x128xf32>
    %109 = arith.addf %107, %108 : vector<8x128xf32>
    %110 = arith.mulf %109, %3 : vector<8x128xf32>
    %cst_41 = arith.constant 29969.5938 : f32
    %111 = vector.broadcast %cst_41 : f32 to vector<8x128xf32>
    %112 = arith.addf %110, %111 : vector<8x128xf32>
    %cst_42 = arith.constant 7.000000e+00 : f32
    %113 = vector.broadcast %cst_42 : f32 to vector<8x128xf32>
    %114 = arith.addf %3, %113 : vector<8x128xf32>
    %115 = arith.mulf %3, %114 : vector<8x128xf32>
    %cst_43 = arith.constant 6.000000e+00 : f32
    %116 = vector.broadcast %cst_43 : f32 to vector<8x128xf32>
    %117 = arith.addf %115, %116 : vector<8x128xf32>
    %cst_44 = arith.constant 1.000000e+01 : f32
    %118 = vector.broadcast %cst_44 : f32 to vector<8x128xf32>
    %119 = arith.addf %115, %118 : vector<8x128xf32>
    %120 = arith.mulf %117, %119 : vector<8x128xf32>
    %cst_45 = arith.constant 1.200000e+01 : f32
    %121 = vector.broadcast %cst_45 : f32 to vector<8x128xf32>
    %122 = arith.addf %115, %121 : vector<8x128xf32>
    %123 = arith.mulf %120, %122 : vector<8x128xf32>
    %cst_46 = arith.constant 1.000000e+00 : f32
    %124 = vector.broadcast %cst_46 : f32 to vector<8x128xf32>
    %125 = arith.mulf %124, %6 : vector<8x128xf32>
    %cst_47 = arith.constant 33.4583321 : f32
    %126 = vector.broadcast %cst_47 : f32 to vector<8x128xf32>
    %127 = arith.addf %125, %126 : vector<8x128xf32>
    %128 = arith.mulf %127, %6 : vector<8x128xf32>
    %cst_48 = arith.constant 466.334198 : f32
    %129 = vector.broadcast %cst_48 : f32 to vector<8x128xf32>
    %130 = arith.addf %128, %129 : vector<8x128xf32>
    %131 = arith.mulf %130, %6 : vector<8x128xf32>
    %cst_49 = arith.constant 3465.70947 : f32
    %132 = vector.broadcast %cst_49 : f32 to vector<8x128xf32>
    %133 = arith.addf %131, %132 : vector<8x128xf32>
    %134 = arith.mulf %133, %6 : vector<8x128xf32>
    %cst_50 = arith.constant 14484.9141 : f32
    %135 = vector.broadcast %cst_50 : f32 to vector<8x128xf32>
    %136 = arith.addf %134, %135 : vector<8x128xf32>
    %137 = arith.mulf %136, %6 : vector<8x128xf32>
    %cst_51 = arith.constant 32281.0645 : f32
    %138 = vector.broadcast %cst_51 : f32 to vector<8x128xf32>
    %139 = arith.addf %137, %138 : vector<8x128xf32>
    %140 = arith.mulf %139, %6 : vector<8x128xf32>
    %cst_52 = arith.constant 29969.5938 : f32
    %141 = vector.broadcast %cst_52 : f32 to vector<8x128xf32>
    %142 = arith.addf %140, %141 : vector<8x128xf32>
    %cst_53 = arith.constant 7.000000e+00 : f32
    %143 = vector.broadcast %cst_53 : f32 to vector<8x128xf32>
    %144 = arith.addf %6, %143 : vector<8x128xf32>
    %145 = arith.mulf %6, %144 : vector<8x128xf32>
    %cst_54 = arith.constant 6.000000e+00 : f32
    %146 = vector.broadcast %cst_54 : f32 to vector<8x128xf32>
    %147 = arith.addf %145, %146 : vector<8x128xf32>
    %cst_55 = arith.constant 1.000000e+01 : f32
    %148 = vector.broadcast %cst_55 : f32 to vector<8x128xf32>
    %149 = arith.addf %145, %148 : vector<8x128xf32>
    %150 = arith.mulf %147, %149 : vector<8x128xf32>
    %cst_56 = arith.constant 1.200000e+01 : f32
    %151 = vector.broadcast %cst_56 : f32 to vector<8x128xf32>
    %152 = arith.addf %145, %151 : vector<8x128xf32>
    %153 = arith.mulf %150, %152 : vector<8x128xf32>
    %154 = arith.mulf %52, %123 : vector<8x128xf32>
    %155 = arith.mulf %63, %112 : vector<8x128xf32>
    %156 = tpu.reciprocal %155 {approx = true} : vector<8x128xf32> -> vector<8x128xf32>
    %157 = arith.mulf %154, %156 : vector<8x128xf32>
    %158 = arith.mulf %82, %153 : vector<8x128xf32>
    %159 = arith.mulf %93, %142 : vector<8x128xf32>
    %160 = tpu.reciprocal %159 {approx = true} : vector<8x128xf32> -> vector<8x128xf32>
    %161 = arith.mulf %158, %160 : vector<8x128xf32>
    %162 = arith.addf %0, %1 : vector<8x128xf32>
    %163 = arith.mulf %162, %3 : vector<8x128xf32>
    %164 = arith.mulf %163, %6 : vector<8x128xf32>
    %165 = arith.mulf %0, %1 : vector<8x128xf32>
    %166 = tpu.reciprocal %165 {approx = true} : vector<8x128xf32> -> vector<8x128xf32>
    %167 = arith.mulf %164, %166 : vector<8x128xf32>
    %cst_57 = arith.constant 1.000000e+00 : f32
    %168 = vector.broadcast %cst_57 : f32 to vector<8x128xf32>
    %169 = arith.addf %33, %168 : vector<8x128xf32>
    %170 = arith.mulf %157, %161 : vector<8x128xf32>
    %171 = arith.mulf %170, %167 : vector<8x128xf32>
    %172 = math.log %171 : vector<8x128xf32>
    %173 = arith.addf %169, %172 : vector<8x128xf32>
    %c0_i32 = arith.constant 0 : i32
    %174 = arith.cmpi ne, %arg0, %c0_i32 : i32
    %175 = arith.extui %174 : i1 to i32
    %c0_i32_58 = arith.constant 0 : i32
    %176 = arith.cmpi ne, %175, %c0_i32_58 : i32
    scf.if %176 {
      %180 = vector.shape_cast %173 : vector<8x128xf32> to vector<1x8x128xf32>
      %cst_61 = arith.constant dense<0.000000e+00> : vector<8x128xf32>
      %181 = vector.multi_reduction <add>, %180, %cst_61 [0] : vector<1x8x128xf32> to vector<8x128xf32>
      %182 = vector.shape_cast %181 : vector<8x128xf32> to vector<1x8x128xf32>
      %c0_62 = arith.constant 0 : index
      %c0_63 = arith.constant 0 : index
      %c0_64 = arith.constant 0 : index
      %183 = vector.load %arg4[%c0_62, %c0_63, %c0_64] : memref<1x8x128xf32, #tpu.memory_space<vmem>>, vector<1x8x128xf32>
      tpu.vector_store %arg4[%c0_62, %c0_63, %c0_64], %182 {strides = array<i32>} : memref<1x8x128xf32, #tpu.memory_space<vmem>>, vector<1x8x128xf32>,
    } else {
    }
    %c0_i32_59 = arith.constant 0 : i32
    %177 = arith.cmpi eq, %arg0, %c0_i32_59 : i32
    %178 = arith.extui %177 : i1 to i32
    %c0_i32_60 = arith.constant 0 : i32
    %179 = arith.cmpi ne, %178, %c0_i32_60 : i32
    scf.if %179 {
      %180 = tpu.iota {dimensions = array<i32: 0>} : vector<8x128xi32>
      %181 = tpu.iota {dimensions = array<i32: 1>} : vector<8x128xi32>
      %c1024_i32 = arith.constant 1024 : i32
      %182 = arith.muli %arg0, %c1024_i32 : i32
      %c512_i32 = arith.constant 512 : i32
      %183 = arith.subi %c512_i32, %182 : i32
      %c128_i32 = arith.constant 128 : i32
      %184 = vector.broadcast %c128_i32 : i32 to vector<8x128xi32>
      %185 = arith.muli %180, %184 : vector<8x128xi32>
      %186 = arith.addi %185, %181 : vector<8x128xi32>
      %187 = vector.broadcast %183 : i32 to vector<8x128xi32>
      %188 = arith.cmpi slt, %186, %187 : vector<8x128xi32>
      %cst_61 = arith.constant 0.000000e+00 : f32
      %189 = vector.broadcast %cst_61 : f32 to vector<8x128xf32>
      %190 = arith.select %188, %173, %189 : vector<8x128xi1>, vector<8x128xf32>
      %191 = vector.shape_cast %190 : vector<8x128xf32> to vector<1x8x128xf32>
      %cst_62 = arith.constant dense<0.000000e+00> : vector<8x128xf32>
      %192 = vector.multi_reduction <add>, %191, %cst_62 [0] : vector<1x8x128xf32> to vector<8x128xf32>
      %193 = vector.shape_cast %192 : vector<8x128xf32> to vector<1x8x128xf32>
      %c0_63 = arith.constant 0 : index
      %c0_64 = arith.constant 0 : index
      %c0_65 = arith.constant 0 : index
      %194 = vector.load %arg4[%c0_63, %c0_64, %c0_65] : memref<1x8x128xf32, #tpu.memory_space<vmem>>, vector<1x8x128xf32>
      tpu.vector_store %arg4[%c0_63, %c0_64, %c0_65], %193 {strides = array<i32>} : memref<1x8x128xf32, #tpu.memory_space<vmem>>, vector<1x8x128xf32>,
    } else {
    }
    return
  }
  func.func @transform_0(%arg0: i32) -> (i32, i32) {
    %c0_i32 = arith.constant 0 : i32
    %c0_i32_0 = arith.constant 0 : i32
    return %arg0, %c0_i32 : i32, i32
  }
  func.func @transform_1(%arg0: i32) -> (i32, i32) {
    %c0_i32 = arith.constant 0 : i32
    %c0_i32_0 = arith.constant 0 : i32
    return %arg0, %c0_i32 : i32, i32
  }
  func.func @transform_2(%arg0: i32) -> (i32, i32) {
    %c0_i32 = arith.constant 0 : i32
    %c0_i32_0 = arith.constant 0 : i32
    return %arg0, %c0_i32 : i32, i32
  }
  func.func @transform_3(%arg0: i32) -> (i32, i32, i32) {
    %c0_i32 = arith.constant 0 : i32
    %c0_i32_0 = arith.constant 0 : i32
    %c0_i32_1 = arith.constant 0 : i32
    return %arg0, %c0_i32, %c0_i32_0 : i32, i32, i32
  }
}

</mosaic_0001>

<llo_original>
// kernel: tpu_custom_call.1
$region0: #{tpu_custom_call.1}
  #allocation0 [shape = 'u32[]', space=smem, size = 0x4, offset = 0x4, fixed_abs, tag = 'smem constant byte address 0x4 - core index']
  #allocation1 [shape = 'u32[144,128]{1,0:T(1,128)}', space=vmem, size = 0x12000, scoped, tag = 'internal scratch']
  %s0 = inlined_call_operand.hbm [shape: f32[8,128], index: 0, kind: input, shape index: {}]
  %s1 = inlined_call_operand.hbm [shape: f32[8,128], index: 1, kind: input, shape index: {}]
  %s2 = inlined_call_operand.hbm [shape: f32[8,128], index: 2, kind: input, shape index: {}]
  %s3 = inlined_call_operand.hbm [shape: f32[1,8,128], index: 3, kind: output, shape index: {}]
  %s4 = sld [smem:[#allocation0]]
  $region42: #{tpu_custom_call.1} parent=0
    _
  %s6 = ssub.s32 1, %s4
  %s7 = scalar_select 0, %s6, %s4
  $region1: #{tpu_custom_call.1} parent=0
    #allocation2 [shape = 'u8[4096]{0}', space=vmem, size = 0x1000, scoped, tag = 'input window, operand 0, single buffered']
    #allocation3 [shape = 's32[1]{0}', space=sflag, size = 0x4, scoped, tag = 'scoped memory for tpu_custom_call.1']
    #allocation4 [shape = 's32[1]{0}', space=sflag, size = 0x4, scoped, tag = 'scoped memory for tpu_custom_call.1']
    #allocation5 [shape = 'u8[4096]{0}', space=vmem, size = 0x1000, scoped, tag = 'input window, operand 1, single buffered']
    #allocation6 [shape = 's32[1]{0}', space=sflag, size = 0x4, scoped, tag = 'scoped memory for tpu_custom_call.1']
    #allocation7 [shape = 'u8[4096]{0}', space=vmem, size = 0x1000, scoped, tag = 'input window, operand 2, single buffered']
    #allocation8 [shape = 'u8[4096]{0}', space=vmem, size = 0x1000, scoped, tag = 'output window, operand 0, single buffered']
    %8 = vsyncpa [#allocation3], 0
    %9 = vsyncpa [#allocation6], 0
    %10 = vsyncpa [#allocation4], 0
    // Predicated region
    $region2: #{tpu_custom_call.1} parent=1 // pred_check
      _
    $region3: #{tpu_custom_call.1} parent=1 // pred_check_branch
      %12 = sbr.rel (0) target = $region5
    $region4: #{tpu_custom_call.1} parent=1 // pred_region
      %s14 = ssub.s32 128, 128
      %15 = vsyncadd [#allocation3], %s14
      %s17 = sshll.u32 [#allocation2], 4
      %s18 = int_to_ptr.vmem [resolvable:$true] %s17
      %20 = dma.hbm_to_vmem [thread:$0]  %s0, 128, %s18, [#allocation3]
    $region5: #{tpu_custom_call.1} parent=1 // pred_fallthru
      _
    // Predicated region
    $region6: #{tpu_custom_call.1} parent=1 // pred_check
      _
    $region7: #{tpu_custom_call.1} parent=1 // pred_check_branch
      %22 = sbr.rel (0) target = $region9
    $region8: #{tpu_custom_call.1} parent=1 // pred_region
      %s24 = ssub.s32 128, 128
      %25 = vsyncadd [#allocation6], %s24
      %s27 = sshll.u32 [#allocation5], 4
      %s28 = int_to_ptr.vmem [resolvable:$true] %s27
      %30 = dma.hbm_to_vmem [thread:$0]  %s1, 128, %s28, [#allocation6]
    $region9: #{tpu_custom_call.1} parent=1 // pred_fallthru
      _
    // Predicated region
    $region10: #{tpu_custom_call.1} parent=1 // pred_check
      _
    $region11: #{tpu_custom_call.1} parent=1 // pred_check_branch
      %32 = sbr.rel (0) target = $region13
    $region12: #{tpu_custom_call.1} parent=1 // pred_region
      %s34 = ssub.s32 128, 128
      %35 = vsyncadd [#allocation6], %s34
      %s37 = sshll.u32 [#allocation7], 4
      %s38 = int_to_ptr.vmem [resolvable:$true] %s37
      %40 = dma.hbm_to_vmem [thread:$0]  %s2, 128, %s38, [#allocation6]
    $region13: #{tpu_custom_call.1} parent=1 // pred_fallthru
      _
    // Predicated region
    $region14: #{tpu_custom_call.1} parent=1 // pred_check
      _
    $region15: #{tpu_custom_call.1} parent=1 // pred_check_branch
      %42 = sbr.rel (0) target = $region17
    $region16: #{tpu_custom_call.1} parent=1 // pred_region
      %43 = dma.done [#allocation3], 128
    $region17: #{tpu_custom_call.1} parent=1 // pred_fallthru
      _
    // Predicated region
    $region18: #{tpu_custom_call.1} parent=1 // pred_check
      _
    $region19: #{tpu_custom_call.1} parent=1 // pred_check_branch
      %45 = sbr.rel (0) target = $region21
    $region20: #{tpu_custom_call.1} parent=1 // pred_region
      %46 = dma.done [#allocation6], 128
    $region21: #{tpu_custom_call.1} parent=1 // pred_fallthru
      _
    // Predicated region
    $region22: #{tpu_custom_call.1} parent=1 // pred_check
      _
    $region23: #{tpu_custom_call.1} parent=1 // pred_check_branch
      %48 = sbr.rel (0) target = $region25
    $region24: #{tpu_custom_call.1} parent=1 // pred_region
      %49 = dma.done [#allocation6], 128
    $region25: #{tpu_custom_call.1} parent=1 // pred_fallthru
      _
    %v50 = vld [vmem:[#allocation2] sm:$0xff]
    %v51 = vld [vmem:[#allocation5] sm:$0xff]
    %v52 = vld [vmem:[#allocation7] sm:$0xff]
    %v53 = vadd.f32 %v52, %v50
    %v54 = vsub.f32 1.0, %v52
    %v55 = vadd.f32 %v54, %v51
    %v56 = vadd.f32 %v50, 0.5
    %v57 = vadd.f32 %v50, 5.5
    %v58 = vlog2.pop %v57
    %v59 = vmul.f32 %v58, 0.6931472
    %v60 = vmul.f32 %v56, %v59
    %v61 = vadd.f32 %v51, 0.5
    %v62 = vadd.f32 %v51, 5.5
    %v63 = vlog2.pop %v62
    %v64 = vmul.f32 %v63, 0.6931472
    %v65 = vmul.f32 %v61, %v64
    %v66 = vadd.f32 %v60, %v65
    %v67 = vadd.f32 %v53, 0.5
    %v68 = vadd.f32 %v53, 5.5
    %v69 = vlog2.pop %v68
    %v70 = vmul.f32 %v69, 0.6931472
    %v71 = vmul.f32 %v67, %v70
    %v72 = vsub.f32 %v66, %v71
    %v73 = vadd.f32 %v55, 0.5
    %v74 = vadd.f32 %v55, 5.5
    %v75 = vlog2.pop %v74
    %v76 = vmul.f32 %v75, 0.6931472
    %v77 = vmul.f32 %v73, %v76
    %v78 = vsub.f32 %v72, %v77
    %v79 = vadd.f32 %v50, 33.458332
    %v80 = vmul.f32 %v79, %v50
    %v81 = vadd.f32 %v80, 466.3342
    %v82 = vmul.f32 %v81, %v50
    %v83 = vadd.f32 %v82, 3465.7095
    %v84 = vmul.f32 %v83, %v50
    %v85 = vadd.f32 %v84, 14484.914
    %v86 = vmul.f32 %v85, %v50
    %v87 = vadd.f32 %v86, 32281.064
    %v88 = vmul.f32 %v87, %v50
    %v89 = vadd.f32 %v88, 29969.594
    %v90 = vadd.f32 %v50, 7.0
    %v91 = vmul.f32 %v50, %v90
    %v92 = vadd.f32 %v91, 6.0
    %v93 = vadd.f32 %v91, 10.0
    %v94 = vmul.f32 %v92, %v93
    %v95 = vadd.f32 %v91, 12.0
    %v96 = vmul.f32 %v94, %v95
    %v97 = vadd.f32 %v51, 33.458332
    %v98 = vmul.f32 %v97, %v51
    %v99 = vadd.f32 %v98, 466.3342
    %v100 = vmul.f32 %v99, %v51
    %v101 = vadd.f32 %v100, 3465.7095
    %v102 = vmul.f32 %v101, %v51
    %v103 = vadd.f32 %v102, 14484.914
    %v104 = vmul.f32 %v103, %v51
    %v105 = vadd.f32 %v104, 32281.064
    %v106 = vmul.f32 %v105, %v51
    %v107 = vadd.f32 %v106, 29969.594
    %v108 = vadd.f32 %v51, 7.0
    %v109 = vmul.f32 %v51, %v108
    %v110 = vadd.f32 %v109, 6.0
    %v111 = vadd.f32 %v109, 10.0
    %v112 = vmul.f32 %v110, %v111
    %v113 = vadd.f32 %v109, 12.0
    %v114 = vmul.f32 %v112, %v113
    %v115 = vadd.f32 %v53, 33.458332
    %v116 = vmul.f32 %v115, %v53
    %v117 = vadd.f32 %v116, 466.3342
    %v118 = vmul.f32 %v117, %v53
    %v119 = vadd.f32 %v118, 3465.7095
    %v120 = vmul.f32 %v119, %v53
    %v121 = vadd.f32 %v120, 14484.914
    %v122 = vmul.f32 %v121, %v53
    %v123 = vadd.f32 %v122, 32281.064
    %v124 = vmul.f32 %v123, %v53
    %v125 = vadd.f32 %v124, 29969.594
    %v126 = vadd.f32 %v53, 7.0
    %v127 = vmul.f32 %v53, %v126
    %v128 = vadd.f32 %v127, 6.0
    %v129 = vadd.f32 %v127, 10.0
    %v130 = vmul.f32 %v128, %v129
    %v131 = vadd.f32 %v127, 12.0
    %v132 = vmul.f32 %v130, %v131
    %v133 = vadd.f32 %v55, 33.458332
    %v134 = vmul.f32 %v133, %v55
    %v135 = vadd.f32 %v134, 466.3342
    %v136 = vmul.f32 %v135, %v55
    %v137 = vadd.f32 %v136, 3465.7095
    %v138 = vmul.f32 %v137, %v55
    %v139 = vadd.f32 %v138, 14484.914
    %v140 = vmul.f32 %v139, %v55
    %v141 = vadd.f32 %v140, 32281.064
    %v142 = vmul.f32 %v141, %v55
    %v143 = vadd.f32 %v142, 29969.594
    %v144 = vadd.f32 %v55, 7.0
    %v145 = vmul.f32 %v55, %v144
    %v146 = vadd.f32 %v145, 6.0
    %v147 = vadd.f32 %v145, 10.0
    %v148 = vmul.f32 %v146, %v147
    %v149 = vadd.f32 %v145, 12.0
    %v150 = vmul.f32 %v148, %v149
    %v151 = vmul.f32 %v89, %v132
    %v152 = vmul.f32 %v96, %v125
    %v153 = vrcp.pop %v152
    %v154 = vmul.f32 %v151, %v153
    %v155 = vmul.f32 %v107, %v150
    %v156 = vmul.f32 %v114, %v143
    %v157 = vrcp.pop %v156
    %v158 = vmul.f32 %v155, %v157
    %v159 = vadd.f32 %v50, %v51
    %v160 = vmul.f32 %v159, %v53
    %v161 = vmul.f32 %v160, %v55
    %v162 = vmul.f32 %v50, %v51
    %v163 = vrcp.pop %v162
    %v164 = vmul.f32 %v161, %v163
    %v165 = vadd.f32 %v78, 1.0
    %v166 = vmul.f32 %v154, %v158
    %v167 = vmul.f32 %v166, %v164
    %v168 = vlog2.pop %v167
    %v169 = vmul.f32 %v168, 0.6931472
    %v170 = vadd.f32 %v165, %v169
    %p171 = scmp.ne.s32.totalorder 0, 0
    // Predicated region
    $region26: #{tpu_custom_call.1} parent=1 // pred_check
      %p172 = pneg %p171
    $region27: #{tpu_custom_call.1} parent=1 // pred_check_branch
      %174 = sbr.rel (%p172) target = $region29
    $region28: #{tpu_custom_call.1} parent=1 // pred_region
      %v175 = vadd.f32 %v170, 0.0
      %176 = vst [vmem:[#allocation8] sm:$0xff] %v175
    $region29: #{tpu_custom_call.1} parent=1 // pred_fallthru
      _
    %p177 = scmp.eq.s32.totalorder 0, 0
    // Predicated region
    $region30: #{tpu_custom_call.1} parent=1 // pred_check
      %p178 = pneg %p177
    $region31: #{tpu_custom_call.1} parent=1 // pred_check_branch
      %180 = sbr.rel (%p178) target = $region33
    $region32: #{tpu_custom_call.1} parent=1 // pred_region
      %v181 = vlaneseq
      %v182 = vshrl.u32 %v181, 7
      %v183 = vlaneseq
      %v184 = vand.u32 %v183, 127
      %s185 = smul.u32 0, 1024
      %s186 = ssub.s32 512, %s185
      %v187 = vmul.u32 %v182, 128
      %v188 = vadd.s32 %v187, %v184
      %v189 = vstv %s186
      %vm190 = vcmp.lt.s32.totalorder %v188, %v189
      %v191 = vsel %vm190, %v170, 0.0
      %v192 = vadd.f32 %v191, 0.0
      %193 = vst [vmem:[#allocation8] sm:$0xff] %v192
    $region33: #{tpu_custom_call.1} parent=1 // pred_fallthru
      _
    // Predicated region
    $region34: #{tpu_custom_call.1} parent=1 // pred_check
      _
    $region35: #{tpu_custom_call.1} parent=1 // pred_check_branch
      %195 = sbr.rel (0) target = $region37
    $region36: #{tpu_custom_call.1} parent=1 // pred_region
      %s197 = ssub.s32 128, 128
      %198 = vsyncadd [#allocation4], %s197
      %s200 = sshll.u32 [#allocation8], 4
      %s201 = int_to_ptr.vmem [resolvable:$true] %s200
      %203 = dma.vmem_to_hbm [thread:$0]  %s201, 128, %s3, [#allocation4]
    $region37: #{tpu_custom_call.1} parent=1 // pred_fallthru
      _
    // Predicated region
    $region38: #{tpu_custom_call.1} parent=1 // pred_check
      _
    $region39: #{tpu_custom_call.1} parent=1 // pred_check_branch
      %205 = sbr.rel (0) target = $region41
    $region40: #{tpu_custom_call.1} parent=1 // pred_region
      %206 = dma.done [#allocation4], 128
    $region41: #{tpu_custom_call.1} parent=1 // pred_fallthru
      _
    %207 = vsyncpa [#allocation3], 1
    %208 = vsyncpa [#allocation6], 1
    %209 = vsyncpa [#allocation4], 1

</llo_original>
